<compile_context>
chip_gen: v5e
topology: v5e:2x2
jax: 0.10.0
libtpu: 0.0.40
codegen_flags: <defaults>
</compile_context>

<pallas_src>
import functools

import jax
import jax.numpy as jnp
from jax.experimental import pallas as pl
from jax.experimental.pallas import tpu as pltpu

_LANE = 128
_VMEM_LIMIT_BYTES = 48 * 1024 * 1024    # explicit scoped-VMEM limit (safe on v5e/v6e/v7x)
_VMEM_BLOCK_BUDGET = 16 * 1024 * 1024   # target for double-buffered blocks per grid step


def _round_up(v, m):
    return -(-v // m) * m


# -----------------------------------------------------------------------------
# Kernels (weight-stationary: (Cout, CK) @ (CK, TILE_P) -> (Cout, TILE_P))
# -----------------------------------------------------------------------------

def _conv_in_act_fused_kernel(x_ref, w_ref, o_ref, *, eps, neg_slope, inv_count,
                              apply_act):
    """Fused conv + InstanceNorm + LeakyReLU; whole spatial extent resident.

    x_ref: (1, CK, Pp)   w_ref: (Cout, CK)   o_ref: (1, Cout, Pp)
    Bias is intentionally dropped (cancelled exactly by InstanceNorm).  Padded
    spatial columns of x are exact zeros and contribute 0 to sum / sum-sq, so
    the statistics use the true spatial count via inv_count.
    """
    y = jnp.dot(w_ref[...], x_ref[0], preferred_element_type=jnp.float32)  # (Cout, Pp) f32
    mean = jnp.sum(y, axis=1, keepdims=True) * inv_count                   # (Cout, 1)
    ex2 = jnp.sum(y * y, axis=1, keepdims=True) * inv_count                # (Cout, 1)
    var = ex2 - mean * mean
    y = (y - mean) * jax.lax.rsqrt(var + eps)
    if apply_act:
        y = jnp.where(y > 0, y, neg_slope * y)
    o_ref[0] = y.astype(o_ref.dtype)


def _conv_stats_kernel(x_ref, w_ref, y_ref, s1_ref, s2_ref):
    """Pass 1 of the spatially tiled path: conv tile + per-channel sum / sumsq.

    s1_ref / s2_ref are (1, Cout, 1) resident accumulator output blocks
    (index map constant along the spatial-tile grid axis)."""
    y = jnp.dot(w_ref[...], x_ref[0], preferred_element_type=jnp.float32)  # (Cout, TP)
    y_ref[0] = y

    @pl.when(pl.program_id(1) == 0)
    def _():
        s1_ref[...] = jnp.zeros_like(s1_ref)
        s2_ref[...] = jnp.zeros_like(s2_ref)

    s1_ref[0] += jnp.sum(y, axis=1, keepdims=True)        # (Cout, 1)
    s2_ref[0] += jnp.sum(y * y, axis=1, keepdims=True)    # (Cout, 1)


def _norm_act_kernel(y_ref, s1_ref, s2_ref, o_ref, *, eps, neg_slope, inv_count,
                     apply_act):
    """Pass 2 of the tiled path: normalize with accumulated stats + LeakyReLU."""
    y = y_ref[0]                                   # (Cout, TP) f32
    mean = s1_ref[0] * inv_count                   # (Cout, 1)
    var = s2_ref[0] * inv_count - mean * mean
    y = (y - mean) * jax.lax.rsqrt(var + eps)
    if apply_act:
        y = jnp.where(y > 0, y, neg_slope * y)
    o_ref[0] = y.astype(o_ref.dtype)


def _conv_bias_act_kernel(x_ref, w_ref, b_ref, o_ref, *, neg_slope, apply_act):
    """norm=False path: conv + bias (+ LeakyReLU), no normalization."""
    y = jnp.dot(w_ref[...], x_ref[0], preferred_element_type=jnp.float32)
    y = y + b_ref[...]                             # (Cout, 1) broadcast over lanes
    if apply_act:
        y = jnp.where(y > 0, y, neg_slope * y)
    o_ref[0] = y.astype(o_ref.dtype)


# -----------------------------------------------------------------------------
# Wrapper
# -----------------------------------------------------------------------------

def conv_block_forward(x, weight, bias, *, stride=1, padding=1, norm=True,
                       apply_act=True, neg_slope=0.01, eps=1e-5,
                       matmul_dtype=jnp.bfloat16, tile_p=None):
    """Forward of the LSGAN `Conv` block.

    x: (N, Cin, H, W) NCHW; weight: (Cout, Cin, K, K); bias: (Cout,).
    Returns (N, Cout, H_out, W_out) in x.dtype.
    """
    N, Cin, H, W = x.shape
    Cout, _, K, _ = weight.shape
    H_out = (H + 2 * padding - K) // stride + 1
    W_out = (W + 2 * padding - K) // stride + 1
    P = H_out * W_out
    CK = Cin * K * K
    mm_bytes = jnp.dtype(matmul_dtype).itemsize

    # ---- choose the spatial (lane) tile size --------------------------------
    P128 = _round_up(P, _LANE)
    if tile_p is None:
        # double-buffered x tile + f32 y tile per lane column, plus weights once
        bytes_per_col = 2 * CK * mm_bytes + 2 * Cout * 4
        budget = max(_LANE * bytes_per_col,
                     _VMEM_BLOCK_BUDGET - 2 * Cout * CK * mm_bytes)
        tp = max(_LANE, (budget // bytes_per_col) // _LANE * _LANE)
    else:
        tp = max(_LANE, (tile_p // _LANE) * _LANE)
    tp = min(tp, P128)
    n_pt = -(-P128 // tp)
    P_pad = n_pt * tp           # padded spatial columns are exact zeros

    # ---- im2col (pure layout shuffle, no FLOPs), weight-stationary layout ----
    xp = jnp.pad(x, ((0, 0), (0, 0), (padding, padding), (padding, padding)))
    slabs = []
    for dh in range(K):
        for dw in range(K):
            slabs.append(xp[:, :,
                            dh:dh + (H_out - 1) * stride + 1:stride,
                            dw:dw + (W_out - 1) * stride + 1:stride])
    patches = jnp.stack(slabs, axis=2)                    # (N, Cin, K*K, Ho, Wo)
    x_mat = patches.reshape(N, CK, P)                     # (N, CK, P) — no transpose
    if P_pad != P:
        x_mat = jnp.pad(x_mat, ((0, 0), (0, 0), (0, P_pad - P)))
    x_mat = x_mat.astype(matmul_dtype)
    w_mat = weight.reshape(Cout, CK).astype(matmul_dtype)  # (Cout, CK) — no transpose

    flops = 2 * N * Cout * CK * P_pad
    conv_bytes = (x_mat.size * mm_bytes + w_mat.size * mm_bytes
                  + N * Cout * P_pad * 4)

    # ------------------------------ norm=False -------------------------------
    if not norm:
        b_mat = bias.reshape(Cout, 1).astype(jnp.float32)
        kernel = functools.partial(_conv_bias_act_kernel,
                                   neg_slope=neg_slope, apply_act=apply_act)
        out = pl.pallas_call(
            kernel,
            out_shape=jax.ShapeDtypeStruct((N, Cout, P_pad), x.dtype),
            grid_spec=pltpu.PrefetchScalarGridSpec(
                num_scalar_prefetch=0,
                grid=(N, n_pt),
                in_specs=[
                    pl.BlockSpec((1, CK, tp), lambda n, p: (n, 0, p)),
                    pl.BlockSpec((Cout, CK), lambda n, p: (0, 0)),
                    pl.BlockSpec((Cout, 1), lambda n, p: (0, 0)),
                ],
                out_specs=pl.BlockSpec((1, Cout, tp), lambda n, p: (n, 0, p)),
            ),
            compiler_params=pltpu.CompilerParams(
                dimension_semantics=("parallel", "parallel"),
                vmem_limit_bytes=_VMEM_LIMIT_BYTES),
            cost_estimate=pl.CostEstimate(flops=flops, transcendentals=0,
                                          bytes_accessed=conv_bytes),
        )(x_mat, w_mat, b_mat)
        return out[:, :, :P].reshape(N, Cout, H_out, W_out)

    inv_count = 1.0 / float(P)

    # ------------------- norm=True, whole P fits in one tile ------------------
    if n_pt == 1:
        kernel = functools.partial(_conv_in_act_fused_kernel, eps=eps,
                                   neg_slope=neg_slope, inv_count=inv_count,
                                   apply_act=apply_act)
        out = pl.pallas_call(
            kernel,
            out_shape=jax.ShapeDtypeStruct((N, Cout, P_pad), x.dtype),
            grid_spec=pltpu.PrefetchScalarGridSpec(
                num_scalar_prefetch=0,
                grid=(N,),
                in_specs=[
                    pl.BlockSpec((1, CK, P_pad), lambda n: (n, 0, 0)),
                    pl.BlockSpec((Cout, CK), lambda n: (0, 0)),
                ],
                out_specs=pl.BlockSpec((1, Cout, P_pad), lambda n: (n, 0, 0)),
            ),
            compiler_params=pltpu.CompilerParams(
                dimension_semantics=("parallel",),
                vmem_limit_bytes=_VMEM_LIMIT_BYTES),
            cost_estimate=pl.CostEstimate(flops=flops, transcendentals=N * Cout,
                                          bytes_accessed=conv_bytes),
        )(x_mat, w_mat)
        return out[:, :, :P].reshape(N, Cout, H_out, W_out)

    # ---------------- norm=True, spatially tiled two-pass path ----------------
    # Pass 1: conv tiles + per-(n, channel) sum / sum-of-squares (f32, resident
    # accumulator output block across the spatial-tile axis).
    y, s1, s2 = pl.pallas_call(
        _conv_stats_kernel,
        out_shape=(jax.ShapeDtypeStruct((N, Cout, P_pad), jnp.float32),
                   jax.ShapeDtypeStruct((N, Cout, 1), jnp.float32),
                   jax.ShapeDtypeStruct((N, Cout, 1), jnp.float32)),
        grid_spec=pltpu.PrefetchScalarGridSpec(
            num_scalar_prefetch=0,
            grid=(N, n_pt),
            in_specs=[
                pl.BlockSpec((1, CK, tp), lambda n, p: (n, 0, p)),
                pl.BlockSpec((Cout, CK), lambda n, p: (0, 0)),
            ],
            out_specs=(
                pl.BlockSpec((1, Cout, tp), lambda n, p: (n, 0, p)),
                pl.BlockSpec((1, Cout, 1), lambda n, p: (n, 0, 0)),
                pl.BlockSpec((1, Cout, 1), lambda n, p: (n, 0, 0)),
            ),
        ),
        compiler_params=pltpu.CompilerParams(
            dimension_semantics=("parallel", "arbitrary"),
            vmem_limit_bytes=_VMEM_LIMIT_BYTES),
        cost_estimate=pl.CostEstimate(flops=flops, transcendentals=0,
                                      bytes_accessed=conv_bytes + N * Cout * P_pad * 4),
    )(x_mat, w_mat)

    # Pass 2: normalize each tile with the accumulated stats + LeakyReLU.
    kernel2 = functools.partial(_norm_act_kernel, eps=eps, neg_slope=neg_slope,
                                inv_count=inv_count, apply_act=apply_act)
    out = pl.pallas_call(
        kernel2,
        out_shape=jax.ShapeDtypeStruct((N, Cout, P_pad), x.dtype),
        grid_spec=pltpu.PrefetchScalarGridSpec(
            num_scalar_prefetch=0,
            grid=(N, n_pt),
            in_specs=[
                pl.BlockSpec((1, Cout, tp), lambda n, p: (n, 0, p)),
                pl.BlockSpec((1, Cout, 1), lambda n, p: (n, 0, 0)),
                pl.BlockSpec((1, Cout, 1), lambda n, p: (n, 0, 0)),
            ],
            out_specs=pl.BlockSpec((1, Cout, tp), lambda n, p: (n, 0, p)),
        ),
        compiler_params=pltpu.CompilerParams(
            dimension_semantics=("parallel", "parallel"),
            vmem_limit_bytes=_VMEM_LIMIT_BYTES),
        cost_estimate=pl.CostEstimate(flops=3 * N * Cout * P_pad,
                                      transcendentals=N * Cout,
                                      bytes_accessed=2 * N * Cout * P_pad * 4),
    )(y, s1, s2)
    return out[:, :, :P].reshape(N, Cout, H_out, W_out)


# -----------------------------------------------------------------------------
# Pure-JAX reference (mirrors the PyTorch module)
# -----------------------------------------------------------------------------

def _reference(x, weight, bias, *, stride=1, padding=1, norm=True,
               apply_act=True, eps=1e-5, neg_slope=0.01):
    y = jax.lax.conv_general_dilated(
        x, weight, window_strides=(stride, stride),
        padding=[(padding, padding), (padding, padding)],
        dimension_numbers=("NCHW", "OIHW", "NCHW"))
    y = y + bias.reshape(1, -1, 1, 1)
    if norm:
        mean = y.mean(axis=(2, 3), keepdims=True)
        var = ((y - mean) ** 2).mean(axis=(2, 3), keepdims=True)
        y = (y - mean) * jax.lax.rsqrt(var + eps)
    if apply_act:
        y = jnp.where(y > 0, y, neg_slope * y)
    return y


if __name__ == "__main__":
    # Conv(in_dim=4, out_dim=8, kernel=3, stride=1, padding=1) on (2, 4, 16, 16)
    N, Cin, H, W = 2, 4, 16, 16
    Cout, K = 8, 3

    key = jax.random.PRNGKey(0)
    kx, kw, kb = jax.random.split(key, 3)
    x = jax.random.normal(kx, (N, Cin, H, W), dtype=jnp.float32)
    fan_in = Cin * K * K
    bound = 1.0 / (fan_in ** 0.5)
    weight = jax.random.uniform(kw, (Cout, Cin, K, K), jnp.float32, -bound, bound)
    bias = jax.random.uniform(kb, (Cout,), jnp.float32, -bound, bound)

    ref_f32 = _reference(x, weight, bias)

    # 1) Default path: fused conv + InstanceNorm + LeakyReLU, bf16 MXU inputs.
    #    Compare against a reference fed the same bf16-rounded inputs.
    out = jax.block_until_ready(conv_block_forward(x, weight, bias))
    assert out.shape == (N, Cout, H, W)
    ref_bf16 = _reference(x.astype(jnp.bfloat16).astype(jnp.float32),
                          weight.astype(jnp.bfloat16).astype(jnp.float32), bias)
    assert jnp.allclose(out, ref_bf16, atol=2e-3, rtol=2e-3), "fused bf16 path mismatch"

    # 2) Fused path with f32 matmul inputs: tight check against the f32 reference.
    out_f32 = jax.block_until_ready(
        conv_block_forward(x, weight, bias, matmul_dtype=jnp.float32))
    assert jnp.allclose(out_f32, ref_f32, atol=1e-4, rtol=1e-4), "fused f32 path mismatch"

    # 3) Spatially tiled two-pass path (forced: tile_p=128 -> 2 spatial tiles).
    out_tiled = jax.block_until_ready(
        conv_block_forward(x, weight, bias, matmul_dtype=jnp.float32, tile_p=128))
    assert jnp.allclose(out_tiled, ref_f32, atol=1e-4, rtol=1e-4), "tiled path mismatch"

    # 4) norm=False path (conv + bias + LeakyReLU).
    ref_nonorm = _reference(x, weight, bias, norm=False)
    out_nonorm = jax.block_until_ready(
        conv_block_forward(x, weight, bias, norm=False, matmul_dtype=jnp.float32))
    assert jnp.allclose(out_nonorm, ref_nonorm, atol=1e-4, rtol=1e-4), \
        "norm=False path mismatch"

    print("KERNEL_OK")
</pallas_src>

<mosaic_0001>
module attributes {stable_mosaic.version = 11 : i64} {
  func.func @_conv_in_act_fused_kernel(%arg0: i32, %arg1: memref<1x36x256xbf16, #tpu.memory_space<vmem>>, %arg2: memref<8x36xbf16, #tpu.memory_space<vmem>>, %arg3: memref<1x8x256xf32, #tpu.memory_space<vmem>>) attributes {dimension_semantics = [#tpu.dimension_semantics<parallel>], iteration_bounds = array<i64: 2>, scalar_prefetch = 0 : i64, scratch_operands = 0 : i64, tpu.core_type = #tpu.core_type<tc>, window_params = [{transform_indices = @transform_0, window_bounds = array<i64: 1, 36, 256>}, {pipeline_mode = #tpu.pipeline_mode<synchronous>, transform_indices = @transform_1, window_bounds = array<i64: 8, 36>}, {transform_indices = @transform_2, window_bounds = array<i64: 1, 8, 256>}]} {
    %c0 = arith.constant 0 : index
    %c0_0 = arith.constant 0 : index
    %0 = vector.load %arg2[%c0, %c0_0] : memref<8x36xbf16, #tpu.memory_space<vmem>>, vector<8x36xbf16>
    %c0_1 = arith.constant 0 : index
    %c0_2 = arith.constant 0 : index
    %c0_3 = arith.constant 0 : index
    %1 = vector.load %arg1[%c0_1, %c0_2, %c0_3] : memref<1x36x256xbf16, #tpu.memory_space<vmem>>, vector<1x36x256xbf16>
    %2 = vector.shape_cast %1 : vector<1x36x256xbf16> to vector<36x256xbf16>
    %cst = arith.constant dense<0.000000e+00> : vector<8x256xf32>
    %3 = tpu.matmul %0, %2, %cst {dimension_numbers = #tpu.dot_dimension_numbers<[1], [0], [0], [1], [0, 0, 1, 1], [], []>} : vector<8x36xbf16>, vector<36x256xbf16>, vector<8x256xf32> -> vector<8x256xf32>
    %cst_4 = arith.constant dense<0.000000e+00> : vector<8xf32>
    %4 = vector.multi_reduction <add>, %3, %cst_4 [1] : vector<8x256xf32> to vector<8xf32>
    %5 = vector.shape_cast %4 : vector<8xf32> to vector<8x1xf32>
    %cst_5 = arith.constant 3.906250e-03 : f32
    %6 = vector.broadcast %cst_5 : f32 to vector<8x1xf32>
    %7 = arith.mulf %5, %6 : vector<8x1xf32>
    %8 = arith.mulf %3, %3 : vector<8x256xf32>
    %cst_6 = arith.constant dense<0.000000e+00> : vector<8xf32>
    %9 = vector.multi_reduction <add>, %8, %cst_6 [1] : vector<8x256xf32> to vector<8xf32>
    %10 = vector.shape_cast %9 : vector<8xf32> to vector<8x1xf32>
    %cst_7 = arith.constant 3.906250e-03 : f32
    %11 = vector.broadcast %cst_7 : f32 to vector<8x1xf32>
    %12 = arith.mulf %10, %11 : vector<8x1xf32>
    %13 = arith.mulf %7, %7 : vector<8x1xf32>
    %14 = arith.subf %12, %13 : vector<8x1xf32>
    %15 = vector.broadcast %7 : vector<8x1xf32> to vector<8x256xf32>
    %16 = arith.subf %3, %15 : vector<8x256xf32>
    %cst_8 = arith.constant 9.99999974E-6 : f32
    %17 = vector.broadcast %cst_8 : f32 to vector<8x1xf32>
    %18 = arith.addf %14, %17 : vector<8x1xf32>
    %19 = math.rsqrt %18 : vector<8x1xf32>
    %20 = vector.broadcast %19 : vector<8x1xf32> to vector<8x256xf32>
    %21 = arith.mulf %16, %20 : vector<8x256xf32>
    %cst_9 = arith.constant 0.000000e+00 : f32
    %22 = vector.broadcast %cst_9 : f32 to vector<8x256xf32>
    %23 = arith.cmpf ogt, %21, %22 : vector<8x256xf32>
    %cst_10 = arith.constant 0.00999999977 : f32
    %24 = vector.broadcast %cst_10 : f32 to vector<8x256xf32>
    %25 = arith.mulf %24, %21 : vector<8x256xf32>
    %26 = arith.select %23, %21, %25 : vector<8x256xi1>, vector<8x256xf32>
    %c0_11 = arith.constant 0 : index
    %c0_12 = arith.constant 0 : index
    %c0_13 = arith.constant 0 : index
    %27 = vector.load %arg3[%c0_11, %c0_12, %c0_13] : memref<1x8x256xf32, #tpu.memory_space<vmem>>, vector<1x8x256xf32>
    %28 = vector.shape_cast %27 : vector<1x8x256xf32> to vector<8x256xf32>
    %29 = vector.shape_cast %26 : vector<8x256xf32> to vector<1x8x256xf32>
    tpu.vector_store %arg3[%c0_11, %c0_12, %c0_13], %29 {strides = array<i32>} : memref<1x8x256xf32, #tpu.memory_space<vmem>>, vector<1x8x256xf32>,
    return
  }
  func.func @transform_0(%arg0: i32) -> (i32, i32, i32) {
    %c0_i32 = arith.constant 0 : i32
    %c0_i32_0 = arith.constant 0 : i32
    %c0_i32_1 = arith.constant 0 : i32
    return %arg0, %c0_i32, %c0_i32_0 : i32, i32, i32
  }
  func.func @transform_1(%arg0: i32) -> (i32, i32) {
    %c0_i32 = arith.constant 0 : i32
    %c0_i32_0 = arith.constant 0 : i32
    %c0_i32_1 = arith.constant 0 : i32
    return %c0_i32, %c0_i32_0 : i32, i32
  }
  func.func @transform_2(%arg0: i32) -> (i32, i32, i32) {
    %c0_i32 = arith.constant 0 : i32
    %c0_i32_0 = arith.constant 0 : i32
    %c0_i32_1 = arith.constant 0 : i32
    return %arg0, %c0_i32, %c0_i32_0 : i32, i32, i32
  }
}

</mosaic_0001>

<llo_original>
// kernel: tpu_custom_call.1
$region0: #{tpu_custom_call.1}
  #allocation0 [shape = 'u32[]', space=smem, size = 0x4, offset = 0x4, fixed_abs, tag = 'smem constant byte address 0x4 - core index']
  #allocation1 [shape = 'u32[72,128]{1,0:T(1,128)}', space=vmem, size = 0x9000, scoped, tag = 'internal scratch']
  %s0 = inlined_call_operand.vmem [shape: bf16[2,36,256], index: 0, kind: input, shape index: {}]
  %s1 = inlined_call_operand.vmem [shape: bf16[8,36], index: 1, kind: input, shape index: {}]
  %s2 = inlined_call_operand.hbm [shape: f32[2,8,256], index: 2, kind: output, shape index: {}]
  %s3 = sld [smem:[#allocation0]]
  $region41: #{tpu_custom_call.1} parent=0
    _
  %s5 = ssub.s32 1, %s3
  %s6 = scalar_select 0, %s5, %s3
  $region1: #{tpu_custom_call.1} parent=0
    #allocation2 [shape = 'u8[16384]{0}', space=vmem, size = 0x4000, scoped, tag = 'output window, operand 0']
    #allocation3 [shape = 's32[2]{0}', space=sflag, size = 0x8, scoped, tag = 'scoped memory for tpu_custom_call.1']
    %7 = vsyncpa [#allocation3], 0
    %s8 = scalar_lea.sflag [#allocation3], 1
    %9 = vsyncpa %s8, 0
    loop: start=0, step=1, limit=4
    $region2: #{tpu_custom_call.1} parent=1 // loop_pre_header
      _
    $region3: #{tpu_custom_call.1} parent=1 // loop_header
      %s11 = sphi 0, %s15
      %p12 = scmp.ge.s32.totalorder %s11, 4
      %s21 = sphi 0, %s23
      %s24 = sphi 0, %s21
      %s25 = sphi 0, %s24
      %s41 = sphi 0, %s25
      %s45 = sphi 0, %s45
      %s47 = sphi 0, %s45
      %s48 = sphi 0, %s47
      %s62 = sphi 0, %s48
      %s68 = sphi 0, %s70
      %s71 = sphi 0, %s68
      %s72 = sphi 0, %s71
      %s88 = sphi 0, %s72
    $region4: #{tpu_custom_call.1} parent=1 // loop_header_branch
      %14 = sbr.rel (%p12) target = $region8
    $region5: #{tpu_custom_call.1} parent=1 // loop_body
      %s16 = ssub.s32 %s11, 1
      %s17 = ssub.s32 %s11, 2
      %s18 = sadd.s32 %s11, 1
      %s19 = ssub.s32 %s11, %s18
      %p20 = scmp.eq.s32.totalorder %s19, 0
      %s22 = sadd.s32 %s21, 1
      %s23 = scalar_select %p20, %s21, %s22
      %p26 = pneg %p20
      %p27 = scmp.eq.s32.totalorder %s11, 1
      %p28 = por %p26, %p27
      %p29 = scmp.ne.s32.totalorder %s21, %s24
      %p30 = scmp.eq.s32.totalorder %s11, 0
      %p31 = por %p29, %p30
      %p32 = scmp.ne.s32.totalorder %s21, %s24
      %p33 = scmp.eq.s32.totalorder %s16, 1
      %p34 = por %p32, %p33
      %p35 = scmp.ne.s32.totalorder %s24, %s25
      %p36 = scmp.eq.s32.totalorder %s16, 0
      %p37 = por %p35, %p36
      %p38 = scmp.ne.s32.totalorder %s24, %s25
      %p39 = scmp.eq.s32.totalorder %s17, 1
      %p40 = por %p38, %p39
      %p42 = scmp.ne.s32.totalorder %s25, %s41
      %p43 = scmp.eq.s32.totalorder %s17, 0
      %p44 = por %p42, %p43
      %s46 = sadd.s32 %s45, 1
      %p49 = scmp.eq.s32.totalorder %s11, 1
      %p50 = scmp.ne.s32.totalorder %s45, %s47
      %p51 = scmp.eq.s32.totalorder %s11, 0
      %p52 = por %p50, %p51
      %p53 = scmp.ne.s32.totalorder %s45, %s47
      %p54 = scmp.eq.s32.totalorder %s16, 1
      %p55 = por %p53, %p54
      %p56 = scmp.ne.s32.totalorder %s47, %s48
      %p57 = scmp.eq.s32.totalorder %s16, 0
      %p58 = por %p56, %p57
      %p59 = scmp.ne.s32.totalorder %s47, %s48
      %p60 = scmp.eq.s32.totalorder %s17, 1
      %p61 = por %p59, %p60
      %p63 = scmp.ne.s32.totalorder %s48, %s62
      %p64 = scmp.eq.s32.totalorder %s17, 0
      %p65 = por %p63, %p64
      %s66 = ssub.s32 %s11, %s18
      %p67 = scmp.eq.s32.totalorder %s66, 0
      %s69 = sadd.s32 %s68, 1
      %s70 = scalar_select %p67, %s68, %s69
      %p73 = pneg %p67
      %p74 = scmp.eq.s32.totalorder %s11, 1
      %p75 = por %p73, %p74
      %p76 = scmp.ne.s32.totalorder %s68, %s71
      %p77 = scmp.eq.s32.totalorder %s11, 0
      %p78 = por %p76, %p77
      %p79 = scmp.ne.s32.totalorder %s68, %s71
      %p80 = scmp.eq.s32.totalorder %s16, 1
      %p81 = por %p79, %p80
      %p82 = scmp.ne.s32.totalorder %s71, %s72
      %p83 = scmp.eq.s32.totalorder %s16, 0
      %p84 = por %p82, %p83
      %p85 = scmp.ne.s32.totalorder %s71, %s72
      %p86 = scmp.eq.s32.totalorder %s17, 1
      %p87 = por %p85, %p86
      %p89 = scmp.ne.s32.totalorder %s72, %s88
      %p90 = scmp.eq.s32.totalorder %s17, 0
      %p91 = por %p89, %p90
      %p92 = scmp.le.s32.totalorder 1, %s11
      %p93 = scmp.lt.s32.totalorder %s11, 3
      %p94 = pnand %p92, %p93
      %p95 = pneg %p94
      // Predicated region
      $region9: #{tpu_custom_call.1} parent=5 // pred_check
        _
      $region10: #{tpu_custom_call.1} parent=5 // pred_check_branch
        %97 = sbr.rel (%p94) target = $region12
      $region11: #{tpu_custom_call.1} parent=5 // pred_region
        %s98 = ssub.s32 %s11, 1
        // Predicated region
        $region13: #{tpu_custom_call.1} parent=11 // pred_check
          %p99 = pneg %p58
        $region14: #{tpu_custom_call.1} parent=11 // pred_check_branch
          %101 = sbr.rel (%p99) target = $region16
        $region15: #{tpu_custom_call.1} parent=11 // pred_region
          _
        $region16: #{tpu_custom_call.1} parent=11 // pred_fallthru
          _
      $region12: #{tpu_custom_call.1} parent=5 // pred_fallthru
        _
      %p102 = scmp.lt.s32.totalorder %s11, 2
      // Predicated region
      $region17: #{tpu_custom_call.1} parent=5 // pred_check
        %p103 = pneg %p102
      $region18: #{tpu_custom_call.1} parent=5 // pred_check_branch
        %105 = sbr.rel (%p103) target = $region20
      $region19: #{tpu_custom_call.1} parent=5 // pred_region
        // Predicated region
        $region21: #{tpu_custom_call.1} parent=19 // pred_check
          %p106 = pneg %p31
        $region22: #{tpu_custom_call.1} parent=19 // pred_check_branch
          %108 = sbr.rel (%p106) target = $region24
        $region23: #{tpu_custom_call.1} parent=19 // pred_region
          %p109 = scmp.lt.s32.totalorder %s11, 1
          %s110 = scalar_select %p109, %s11, 1
          %s111 = smul.addr %s110, 10
          %s112 = smul.addr %s111, 4
          %s113 = scalar_lea.vmem %s0, %s112
        $region24: #{tpu_custom_call.1} parent=19 // pred_fallthru
          _
      $region20: #{tpu_custom_call.1} parent=5 // pred_fallthru
        _
      %p114 = scmp.le.s32.totalorder 1, %s11
      %p115 = scmp.lt.s32.totalorder %s11, 3
      %p116 = pnand %p114, %p115
      %p117 = pneg %p116
      // Predicated region
      $region25: #{tpu_custom_call.1} parent=5 // pred_check
        _
      $region26: #{tpu_custom_call.1} parent=5 // pred_check_branch
        %119 = sbr.rel (%p116) target = $region28
      $region27: #{tpu_custom_call.1} parent=5 // pred_region
        %s120 = ssub.s32 %s11, 1
        %p121 = scmp.lt.s32.totalorder %s16, 1
        %s122 = scalar_select %p121, %s16, 1
        %s123 = smul.addr %s122, 10
        %s124 = smul.addr %s123, 4
        %s125 = scalar_lea.vmem %s0, %s124
        %p126 = pneg %p37
        %p127 = pneg %p34
        %p128 = pneg %p58
        %p129 = pneg %p55
        %p130 = pneg %p84
        %p131 = pneg %p81
        %s132 = sand.u32 %s71, 1
        %s133 = scalar_lea.sflag [#allocation3], %s132
        %s134 = sand.u32 %s71, 1
        %s135 = smul.addr %s134, 16
        %s136 = scalar_lea.vmem [#allocation2], %s135
        %p137 = scmp.lt.s32.totalorder %s16, 1
        %s138 = scalar_select %p137, %s16, 1
        %s139 = smul.addr %s138, 10
        %s140 = smul.addr %s139, 4
        %s141 = scalar_lea.vmem %s0, %s140
        %v143 = vld [vmem:[%s1] sm:$0xf]
        %v144 = vld [vmem:[%s141] sm:$0xff]
        %v145 = vld [vmem:[%s141 + $0x8] sm:$0xff]
        %v146 = vld [vmem:[%s141 + $0x10] sm:$0xff]
        %v147 = vld [vmem:[%s141 + $0x18] sm:$0xff]
        %v148 = vld [vmem:[%s141 + $0x20] sm:$0x33]
        %v154 = vunpack.c.l.b16 %v144
        %v155 = vunpack.c.h.b16 %v144
        %v156 = vunpack.c.l.b16 %v145
        %v157 = vunpack.c.h.b16 %v145
        %v158 = vunpack.c.l.b16 %v146
        %v159 = vunpack.c.h.b16 %v146
        %v160 = vunpack.c.l.b16 %v147
        %v161 = vunpack.c.h.b16 %v147
        %v162 = vunpack.c.l.b16 %v148
        %v163 = vunpack.c.h.b16 %v148
        %v164 = vpack.c.b16 %v156, %v154
        %v165 = vpack.c.b16 %v157, %v155
        %v166 = vpack.c.b16 %v160, %v158
        %v167 = vpack.c.b16 %v161, %v159
        %v168 = vpack.c.b16 %v162, %v162
        %v169 = vpack.c.b16 %v163, %v163
        %vm174 = vcmask 293888
        %v176 = vsel %vm174, %v143, 0
        %vm178 = vcmask 1041408
        %v180 = vsel %vm178, %v168, 0
        %v183 = vsel %vm178, %v169, 0
        %185 = vmatpush.bf16.msra.mxu0 0
        %186 = vmatpush.bf16.msra.mxu0 0
        %187 = vmatpush.bf16.msra.mxu0 0
        %188 = vmatpush.bf16.msra.mxu0 0
        %189 = vmatpush.bf16.msra.mxu0 0
        %190 = vmatpush.bf16.msra.mxu0 %v180
        %191 = vmatpush.bf16.msra.mxu0 %v166
        %192 = vmatpush.bf16.msra.mxu0 %v164
        %193 = vmatmul.bf16.gmra.mxu0 %v176
        %v194 = vpop.f32.mrf.mxu0
        %v195 = vadd.f32 0.0, %v194
        %v196 = vpop.f32.mrf.mxu0
        %197 = vdwg.mxu0
        %198 = vmatpush.bf16.msra.mxu0 0
        %199 = vmatpush.bf16.msra.mxu0 0
        %200 = vmatpush.bf16.msra.mxu0 0
        %201 = vmatpush.bf16.msra.mxu0 0
        %202 = vmatpush.bf16.msra.mxu0 0
        %203 = vmatpush.bf16.msra.mxu0 %v183
        %204 = vmatpush.bf16.msra.mxu0 %v167
        %205 = vmatpush.bf16.msra.mxu0 %v165
        %206 = vmatmul.bf16.gmra.mxu0 %v176
        %v207 = vpop.f32.mrf.mxu0
        %v208 = vadd.f32 0.0, %v207
        %v209 = vpop.f32.mrf.mxu0
        %210 = vdwg.mxu0
        %v211 = vadd.f32 %v195, %v208
        %212 = vadd.xlane.f32.xlu0 %v211
        %v213 = vpop.xlane.xlu0 %212
        %v214 = vmul.f32 %v213, 0.00390625
        %v215 = vmul.f32 %v195, %v195
        %v216 = vmul.f32 %v208, %v208
        %v217 = vadd.f32 %v215, %v216
        %218 = vadd.xlane.f32.xlu0 %v217
        %v219 = vpop.xlane.xlu0 %218
        %v220 = vmul.f32 %v219, 0.00390625
        %v221 = vmul.f32 %v214, %v214
        %v222 = vsub.f32 %v220, %v221
        %v223 = vsub.f32 %v195, %v214
        %v224 = vsub.f32 %v208, %v214
        %v225 = vadd.f32 %v222, 1e-05
        %v226 = vrsqrt.pop %v225
        %v227 = vmul.f32 %v226, %v225
        %v228 = vmul.f32 %v227, %v226
        %v229 = vmul.f32 0.5, %v228
        %v230 = vsub.f32 1.5, %v229
        %v231 = vmul.f32 %v226, %v230
        %vm232 = vweird.f32 %v225
        %vm233 = vweird.f32 %v226
        %vm234 = vmor %vm232, %vm233
        %v235 = vsel %vm234, %v226, %v231
        %v236 = vmul.f32 %v223, %v235
        %v237 = vmul.f32 %v224, %v235
        %vm238 = vcmp.gt.f32.partialorder %v236, 0.0
        %vm239 = vcmp.gt.f32.partialorder %v237, 0.0
        %v240 = vmul.f32 %v236, 0.01
        %v241 = vmul.f32 %v237, 0.01
        %v242 = vsel %vm238, %v236, %v240
        %v243 = vsel %vm239, %v237, %v241
        %244 = vst [vmem:[%s136] sm:$0xff] %v242
        %245 = vst [vmem:[%s136 + $0x8] sm:$0xff] %v243
        %s246 = sand.u32 %s71, 1
        %s247 = scalar_lea.sflag [#allocation3], %s246
        %s248 = sand.u32 %s71, 1
        %s249 = smul.addr %s248, 16
        %s250 = scalar_lea.vmem [#allocation2], %s249
        // Predicated region
        $region29: #{tpu_custom_call.1} parent=27 // pred_check
          %p251 = pneg %p81
        $region30: #{tpu_custom_call.1} parent=27 // pred_check_branch
          %253 = sbr.rel (%p251) target = $region32
        $region31: #{tpu_custom_call.1} parent=27 // pred_region
          %255 = vsyncadd %s247, 0
          %s256 = smul.addr %s16, 2
          %s257 = smul.addr %s256, 8
          %s258 = scalar_lea.hbm %s2, %s257
          %s260 = sshll.u32 %s250, 4
          %s261 = int_to_ptr.vmem [resolvable:$true] %s260
          %s262 = sshll.u32 %s258, 4
          %s263 = int_to_ptr.hbm [resolvable:$true] %s262
          %265 = dma.vmem_to_hbm [thread:$0]  %s261, 256, %s263, %s247
        $region32: #{tpu_custom_call.1} parent=27 // pred_fallthru
          _
      $region28: #{tpu_custom_call.1} parent=5 // pred_fallthru
        _
      %p266 = scmp.le.s32.totalorder 2, %s11
      // Predicated region
      $region33: #{tpu_custom_call.1} parent=5 // pred_check
        %p267 = pneg %p266
      $region34: #{tpu_custom_call.1} parent=5 // pred_check_branch
        %269 = sbr.rel (%p267) target = $region36
      $region35: #{tpu_custom_call.1} parent=5 // pred_region
        %s270 = ssub.s32 %s11, 2
        // Predicated region
        $region37: #{tpu_custom_call.1} parent=35 // pred_check
          %p271 = pneg %p87
        $region38: #{tpu_custom_call.1} parent=35 // pred_check_branch
          %273 = sbr.rel (%p271) target = $region40
        $region39: #{tpu_custom_call.1} parent=35 // pred_region
          %s274 = sand.u32 %s72, 1
          %s275 = scalar_lea.sflag [#allocation3], %s274
          %s276 = sand.u32 %s72, 1
          %s277 = smul.addr %s276, 16
          %s278 = scalar_lea.vmem [#allocation2], %s277
          %280 = dma.done %s275, 256
        $region40: #{tpu_custom_call.1} parent=35 // pred_fallthru
          _
      $region36: #{tpu_custom_call.1} parent=5 // pred_fallthru
        _
    $region6: #{tpu_custom_call.1} parent=1 // loop_footer
      %s15 = sadd.s32 1, %s11
    $region7: #{tpu_custom_call.1} parent=1 // loop_footer_branch
      %10 = sbr.rel target = $region3
    $region8: #{tpu_custom_call.1} parent=1 // loop_exit
      _
    %281 = vsyncpa [#allocation3], 1
    %s282 = scalar_lea.sflag [#allocation3], 1
    %283 = vsyncpa %s282, 1

</llo_original>
